<compile_context>
chip_gen: v6e
topology: v6e:2x2x1
jax: 0.10.0
libtpu: 0.0.40
codegen_flags: <defaults>
</compile_context>

<pallas_src>
import jax
import jax.numpy as jnp
from jax.experimental import pallas as pl
from jax.experimental.pallas import tpu as pltpu

# ----- "args" for the module (small, deterministic, self-contained) -----
N_EMBED = 100                 # args.n_embed
D_EMBED = 32                  # args.d_embed
D_PROJ = 32                   # args.d_proj   (args.projection = True)
KERNEL_NUM = 16               # args.kernel_num  (Co)
KERNEL_SIZES = (3, 4, 5)      # args.kernel_sizes
K_MAX = max(KERNEL_SIZES)     # 5
CO3 = len(KERNEL_SIZES) * KERNEL_NUM   # 48 fused conv channels
D_FEATURE = 64                # args.d_feature
N_LABEL = 6                   # args.n_label

SEQ = 16                      # tokens per example
BATCH = 16                    # examples (batched up per perf review to amortize overhead)
BS = BATCH * SEQ              # 256 flattened rows
TILE_B = 8                    # examples per grid tile
TILE_ROWS = TILE_B * SEQ      # 128 rows per tile (fills MXU M on all generations)
N_TILES = BATCH // TILE_B     # grid size (2)

# ----- bf16 weight-blob layout: [R_TOTAL, 128], everything zero-padded -----
LANES = 128
VOCAB_PAD = 128                          # vocab padded to one lane-width for one-hot matmul
R_EPROJ = 0                              # rows [0,128)   : E' = embedding @ w_proj, cols [0,32)
R_WCONV = R_EPROJ + VOCAB_PAD            # rows [128,288) : im2col conv taps, tap k at 128+32k, cols [0,48)
R_WFEAT = R_WCONV + K_MAX * D_PROJ       # rows [288,416) : w_feat (row-padded to 128), cols [0,64)
R_WOUT = R_WFEAT + LANES                 # rows [416,544) : w_out  (row-padded to 128), cols [0,6)
R_TOTAL = R_WOUT + LANES                 # 544 rows (~136 KB bf16, VMEM-resident across the grid)

# ----- f32 aux blob: biases + pre-baked pooling mask, [A_TOTAL, 128] -----
A_BPROJ = 0
A_BCONV = 1
A_BFEAT = 2
A_BOUT = 3
A_MASK = 8                               # rows [8, 8+SEQ): 0/1 ragged valid-length mask
A_TOTAL = A_MASK + SEQ                   # 24 rows


def toxic_cnn_kernel(tok_ref, wblob_ref, aux_ref, out_ref):
    # ---- embedding + projection fused: relu(onehot @ (E @ Wp) + b_proj) ----
    tok = tok_ref[...]                                                      # [TR, 1] int32
    vocab = jax.lax.broadcasted_iota(jnp.int32, (TILE_ROWS, VOCAB_PAD), 1)
    onehot = (vocab == tok).astype(jnp.bfloat16)                            # [TR, 128]
    eproj = wblob_ref[R_EPROJ:R_EPROJ + VOCAB_PAD, 0:D_PROJ]                # [128, 32] bf16
    b_proj = aux_ref[A_BPROJ:A_BPROJ + 1, 0:D_PROJ]                         # [1, 32] f32
    proj = jnp.maximum(
        jnp.dot(onehot, eproj, preferred_element_type=jnp.float32) + b_proj, 0.0)   # [TR, 32] f32

    # ---- fused 48-channel conv as ONE im2col dot: LHS[i, 32k+d] = proj[(i+k) % TR, d] ----
    cols = [proj]
    for k in range(1, K_MAX):                                               # static unroll, XLU rolls
        cols.append(pltpu.roll(proj, TILE_ROWS - k, axis=0))                # row i -> proj[(i+k) % TR]
    lhs = jnp.concatenate(cols, axis=1).astype(jnp.bfloat16)                # [TR, 160]
    w_conv = wblob_ref[R_WCONV:R_WCONV + K_MAX * D_PROJ, :]                 # [160, 128] bf16
    b_conv = aux_ref[A_BCONV:A_BCONV + 1, :]                                # [1, 128] f32
    conv = jnp.maximum(
        jnp.dot(lhs, w_conv, preferred_element_type=jnp.float32) + b_conv, 0.0)     # [TR, 128]

    # ---- pre-baked ragged valid-length mask (resident constant), global max-pool over time ----
    # Wrapped / cross-example rows only land at positions l > SEQ - K, which the mask zeroes;
    # 0-fill is exact because post-ReLU values are >= 0.
    mask = aux_ref[A_MASK:A_MASK + SEQ, :]                                  # [SEQ, 128] f32 0/1
    conv3 = conv.reshape(TILE_B, SEQ, LANES)                                # [b, S, 128]
    pooled = jnp.max(conv3 * mask[None, :, :], axis=1)                      # [b, 128]; cols >=48 are 0

    # ---- encoder feature Linear(48 -> 64) + ReLU (row-padded weights, no lane slice) ----
    w_feat = wblob_ref[R_WFEAT:R_WFEAT + LANES, :]                          # [128, 128] bf16
    b_feat = aux_ref[A_BFEAT:A_BFEAT + 1, :]                                # [1, 128] f32
    feat = jnp.maximum(
        jnp.dot(pooled.astype(jnp.bfloat16), w_feat,
                preferred_element_type=jnp.float32) + b_feat, 0.0)          # [b, 128]; cols >=64 are 0

    # ---- classifier Linear(64 -> 6), lane-padded to 128 for an unmasked [8,128] store ----
    w_out = wblob_ref[R_WOUT:R_WOUT + LANES, :]                             # [128, 128] bf16
    b_out = aux_ref[A_BOUT:A_BOUT + 1, :]                                   # [1, 128] f32
    out_ref[...] = jnp.dot(feat.astype(jnp.bfloat16), w_out,
                           preferred_element_type=jnp.float32) + b_out      # [b, 128]


@jax.jit
def forward(tokens, wblob, aux):
    tok2d = tokens.reshape(BS, 1).astype(jnp.int32)
    logits_pad = pl.pallas_call(
        toxic_cnn_kernel,
        out_shape=jax.ShapeDtypeStruct((BATCH, LANES), jnp.float32),
        grid=(N_TILES,),
        in_specs=[
            pl.BlockSpec((TILE_ROWS, 1), lambda i: (i, 0)),     # per-tile token ids
            pl.BlockSpec((R_TOTAL, LANES), lambda i: (0, 0)),   # weight blob: fetched once, resident
            pl.BlockSpec((A_TOTAL, LANES), lambda i: (0, 0)),   # biases + pooling mask: resident
        ],
        out_specs=pl.BlockSpec((TILE_B, LANES), lambda i: (i, 0)),
        compiler_params=pltpu.CompilerParams(dimension_semantics=("parallel",)),
    )(tok2d, wblob, aux)
    return logits_pad[:, :N_LABEL]


def init_params(key):
    keys = jax.random.split(key, 16)

    def uni(k, shape, fan_in):
        s = 1.0 / jnp.sqrt(jnp.float32(fan_in))
        return jax.random.uniform(k, shape, jnp.float32, -s, s)

    params = {
        'embedding': jax.random.normal(keys[0], (N_EMBED, D_EMBED), jnp.float32),
        'w_proj': uni(keys[1], (D_EMBED, D_PROJ), D_EMBED),
        'b_proj': uni(keys[2], (1, D_PROJ), D_EMBED),
        'w_feat': uni(keys[9], (CO3, D_FEATURE), CO3),
        'b_feat': uni(keys[10], (1, D_FEATURE), CO3),
        'w_out': uni(keys[11], (D_FEATURE, N_LABEL), D_FEATURE),
        'b_out': uni(keys[12], (1, N_LABEL), D_FEATURE),
    }
    for i, K in enumerate(KERNEL_SIZES):
        fan_in = K * D_PROJ
        params[f'w_conv{K}'] = uni(keys[3 + 2 * i], (K, D_PROJ, KERNEL_NUM), fan_in)
        params[f'b_conv{K}'] = uni(keys[4 + 2 * i], (1, KERNEL_NUM), fan_in)
    return params


def pack_params(params):
    """Pack matmul weights into one zero-padded bf16 [R_TOTAL,128] blob, and biases +
    the ragged valid-length pooling mask into a small f32 [A_TOTAL,128] aux blob."""
    wblob = jnp.zeros((R_TOTAL, LANES), jnp.float32)
    # folded embedding @ w_proj table (exact: one-hot selects a single row)
    eproj = params['embedding'] @ params['w_proj']                     # [N_EMBED, D_PROJ]
    wblob = wblob.at[R_EPROJ:R_EPROJ + N_EMBED, :D_PROJ].set(eproj)
    # stacked im2col conv weights: tap k lives at rows [R_WCONV + 32k, +32); taps k >= K stay zero
    for i, K in enumerate(KERNEL_SIZES):
        c0, c1 = i * KERNEL_NUM, (i + 1) * KERNEL_NUM
        w = params[f'w_conv{K}']                                       # [K, D_PROJ, Co]
        for k in range(K):
            wblob = wblob.at[R_WCONV + k * D_PROJ:R_WCONV + (k + 1) * D_PROJ, c0:c1].set(w[k])
    wblob = wblob.at[R_WFEAT:R_WFEAT + CO3, :D_FEATURE].set(params['w_feat'])
    wblob = wblob.at[R_WOUT:R_WOUT + D_FEATURE, :N_LABEL].set(params['w_out'])
    wblob = wblob.astype(jnp.bfloat16)

    aux = jnp.zeros((A_TOTAL, LANES), jnp.float32)
    aux = aux.at[A_BPROJ, :D_PROJ].set(params['b_proj'][0])
    for i, K in enumerate(KERNEL_SIZES):
        c0, c1 = i * KERNEL_NUM, (i + 1) * KERNEL_NUM
        aux = aux.at[A_BCONV, c0:c1].set(params[f'b_conv{K}'][0])
    aux = aux.at[A_BFEAT, :D_FEATURE].set(params['b_feat'][0])
    aux = aux.at[A_BOUT, :N_LABEL].set(params['b_out'][0])
    # pooling mask: position l valid for channel c iff l <= SEQ - K(c); channels >= 48 masked off
    l_idx = jnp.arange(SEQ)[:, None]
    c_idx = jnp.arange(LANES)[None, :]
    k_of_c = KERNEL_SIZES[0] + c_idx // KERNEL_NUM
    valid = (l_idx <= (SEQ - k_of_c)) & (c_idx < CO3)
    aux = aux.at[A_MASK:A_MASK + SEQ, :].set(valid.astype(jnp.float32))
    return wblob, aux


def reference_forward_f32(tokens, params):
    """Pure-JAX f32 reference of the original module semantics."""
    embed = params['embedding'][tokens]                                # [B,S,32]
    proj = jax.nn.relu(embed @ params['w_proj'] + params['b_proj'][0])
    pooled = []
    for K in KERNEL_SIZES:
        w = params[f'w_conv{K}']
        b = params[f'b_conv{K}'][0]
        L = SEQ - K + 1
        acc = jnp.zeros((BATCH, L, KERNEL_NUM), jnp.float32)
        for k in range(K):
            acc = acc + jnp.einsum('bld,dc->blc', proj[:, k:k + L, :], w[k])
        pooled.append(jnp.max(jax.nn.relu(acc + b), axis=1))
    cat = jnp.concatenate(pooled, axis=1)
    feat = jax.nn.relu(cat @ params['w_feat'] + params['b_feat'][0])
    return feat @ params['w_out'] + params['b_out'][0]


def reference_forward_bf16(tokens, params):
    """Same precision choices as the kernel (bf16 weights & matmul inputs, f32 accumulation,
    f32 biases/elementwise), structured like the original module — for a tight check."""
    bf = jnp.bfloat16
    eproj = (params['embedding'] @ params['w_proj']).astype(bf)        # folded + quantized table
    proj = jax.nn.relu(eproj[tokens].astype(jnp.float32) + params['b_proj'][0])
    proj_bf = proj.astype(bf)
    pooled = []
    for K in KERNEL_SIZES:
        w = params[f'w_conv{K}'].astype(bf)
        b = params[f'b_conv{K}'][0]
        L = SEQ - K + 1
        acc = jnp.zeros((BATCH, L, KERNEL_NUM), jnp.float32)
        for k in range(K):
            acc = acc + jnp.einsum('bld,dc->blc', proj_bf[:, k:k + L, :], w[k],
                                   preferred_element_type=jnp.float32)
        pooled.append(jnp.max(jax.nn.relu(acc + b), axis=1))
    cat = jnp.concatenate(pooled, axis=1).astype(bf)
    feat = jax.nn.relu(jnp.dot(cat, params['w_feat'].astype(bf),
                               preferred_element_type=jnp.float32) + params['b_feat'][0])
    return jnp.dot(feat.astype(bf), params['w_out'].astype(bf),
                   preferred_element_type=jnp.float32) + params['b_out'][0]


if __name__ == "__main__":
    key = jax.random.PRNGKey(0)
    pkey, tkey = jax.random.split(key)
    params = init_params(pkey)
    wblob, aux = pack_params(params)
    tokens = jax.random.randint(tkey, (BATCH, SEQ), 0, N_EMBED, dtype=jnp.int32)
    # one-hot embedding requires token ids < VOCAB_PAD (n_embed = 100 < 128)
    assert int(jnp.max(tokens)) < VOCAB_PAD

    logits = forward(tokens, wblob, aux)
    jax.block_until_ready(logits)
    assert logits.shape == (BATCH, N_LABEL)

    # tight check: kernel vs a pure-JAX reference using the same bf16 weight/activation rounding
    ref_q = reference_forward_bf16(tokens, params)
    if not jnp.allclose(logits, ref_q, rtol=1e-3, atol=1e-3):
        diff = float(jnp.max(jnp.abs(logits - ref_q)))
        raise AssertionError(f"Pallas kernel mismatches bf16-weight reference (max |diff| = {diff})")

    # loose sanity check against the original full-f32 semantics (bf16 weights drift slightly)
    ref_f32 = reference_forward_f32(tokens, params)
    if not jnp.allclose(logits, ref_f32, rtol=0.0, atol=0.1):
        diff = float(jnp.max(jnp.abs(logits - ref_f32)))
        raise AssertionError(f"Pallas kernel drifts too far from f32 reference (max |diff| = {diff})")

    print("KERNEL_OK")
</pallas_src>

<mosaic_0001>
module attributes {stable_mosaic.version = 11 : i64} {
  func.func @toxic_cnn_kernel(%arg0: i32, %arg1: memref<128x1xi32, #tpu.memory_space<vmem>>, %arg2: memref<544x128xbf16, #tpu.memory_space<vmem>>, %arg3: memref<24x128xf32, #tpu.memory_space<vmem>>, %arg4: memref<8x128xf32, #tpu.memory_space<vmem>>) attributes {dimension_semantics = [#tpu.dimension_semantics<parallel>], iteration_bounds = array<i64: 2>, scalar_prefetch = 0 : i64, scratch_operands = 0 : i64, tpu.core_type = #tpu.core_type<tc>, window_params = [{transform_indices = @transform_0, window_bounds = array<i64: 128, 1>}, {pipeline_mode = #tpu.pipeline_mode<synchronous>, transform_indices = @transform_1, window_bounds = array<i64: 544, 128>}, {pipeline_mode = #tpu.pipeline_mode<synchronous>, transform_indices = @transform_2, window_bounds = array<i64: 24, 128>}, {transform_indices = @transform_3, window_bounds = array<i64: 8, 128>}]} {
    %c0 = arith.constant 0 : index
    %c0_0 = arith.constant 0 : index
    %0 = vector.load %arg1[%c0, %c0_0] : memref<128x1xi32, #tpu.memory_space<vmem>>, vector<128x1xi32>
    %1 = tpu.iota {dimensions = array<i32: 1>} : vector<128x128xi32>
    %2 = vector.broadcast %0 : vector<128x1xi32> to vector<128x128xi32>
    %3 = arith.cmpi eq, %1, %2 : vector<128x128xi32>
    %4 = arith.extui %3 : vector<128x128xi1> to vector<128x128xi32>
    %5 = arith.sitofp %4 : vector<128x128xi32> to vector<128x128xf32>
    %6 = arith.truncf %5 : vector<128x128xf32> to vector<128x128xbf16>
    %c0_1 = arith.constant 0 : index
    %c0_2 = arith.constant 0 : index
    %7 = vector.load %arg2[%c0_1, %c0_2] : memref<544x128xbf16, #tpu.memory_space<vmem>>, vector<128x32xbf16>
    %c0_3 = arith.constant 0 : index
    %c0_4 = arith.constant 0 : index
    %8 = vector.load %arg3[%c0_3, %c0_4] : memref<24x128xf32, #tpu.memory_space<vmem>>, vector<1x32xf32>
    %cst = arith.constant dense<0.000000e+00> : vector<128x32xf32>
    %9 = tpu.matmul %6, %7, %cst {dimension_numbers = #tpu.dot_dimension_numbers<[1], [0], [0], [1], [0, 0, 1, 1], [], []>} : vector<128x128xbf16>, vector<128x32xbf16>, vector<128x32xf32> -> vector<128x32xf32>
    %10 = vector.broadcast %8 : vector<1x32xf32> to vector<128x32xf32>
    %11 = arith.addf %9, %10 : vector<128x32xf32>
    %cst_5 = arith.constant 0.000000e+00 : f32
    %12 = vector.broadcast %cst_5 : f32 to vector<128x32xf32>
    %13 = arith.maximumf %11, %12 : vector<128x32xf32>
    %c127_i32 = arith.constant 127 : i32
    %14 = tpu.dynamic_rotate %13 by %c127_i32 dim 0 : vector<128x32xf32>, i32 -> vector<128x32xf32>
    %c126_i32 = arith.constant 126 : i32
    %15 = tpu.dynamic_rotate %13 by %c126_i32 dim 0 : vector<128x32xf32>, i32 -> vector<128x32xf32>
    %c125_i32 = arith.constant 125 : i32
    %16 = tpu.dynamic_rotate %13 by %c125_i32 dim 0 : vector<128x32xf32>, i32 -> vector<128x32xf32>
    %c124_i32 = arith.constant 124 : i32
    %17 = tpu.dynamic_rotate %13 by %c124_i32 dim 0 : vector<128x32xf32>, i32 -> vector<128x32xf32>
    %18 = tpu.concatenate %13, %14, %15, %16, %17 in 1 : vector<128x32xf32>, vector<128x32xf32>, vector<128x32xf32>, vector<128x32xf32>, vector<128x32xf32> -> vector<128x160xf32>
    %19 = arith.truncf %18 : vector<128x160xf32> to vector<128x160xbf16>
    %c128 = arith.constant 128 : index
    %c0_6 = arith.constant 0 : index
    %20 = vector.load %arg2[%c128, %c0_6] : memref<544x128xbf16, #tpu.memory_space<vmem>>, vector<160x128xbf16>
    %c1 = arith.constant 1 : index
    %c0_7 = arith.constant 0 : index
    %21 = vector.load %arg3[%c1, %c0_7] : memref<24x128xf32, #tpu.memory_space<vmem>>, vector<1x128xf32>
    %cst_8 = arith.constant dense<0.000000e+00> : vector<128x128xf32>
    %22 = tpu.matmul %19, %20, %cst_8 {dimension_numbers = #tpu.dot_dimension_numbers<[1], [0], [0], [1], [0, 0, 1, 1], [], []>} : vector<128x160xbf16>, vector<160x128xbf16>, vector<128x128xf32> -> vector<128x128xf32>
    %23 = vector.broadcast %21 : vector<1x128xf32> to vector<128x128xf32>
    %24 = arith.addf %22, %23 : vector<128x128xf32>
    %cst_9 = arith.constant 0.000000e+00 : f32
    %25 = vector.broadcast %cst_9 : f32 to vector<128x128xf32>
    %26 = arith.maximumf %24, %25 : vector<128x128xf32>
    %c8 = arith.constant 8 : index
    %c0_10 = arith.constant 0 : index
    %27 = vector.load %arg3[%c8, %c0_10] : memref<24x128xf32, #tpu.memory_space<vmem>>, vector<16x128xf32>
    %28 = vector.shape_cast %26 : vector<128x128xf32> to vector<8x16x128xf32>
    %29 = vector.shape_cast %27 : vector<16x128xf32> to vector<1x16x128xf32>
    %30 = vector.broadcast %29 : vector<1x16x128xf32> to vector<8x16x128xf32>
    %31 = arith.mulf %28, %30 : vector<8x16x128xf32>
    %cst_11 = arith.constant dense<0xFF800000> : vector<8x128xf32>
    %32 = vector.multi_reduction <maximumf>, %31, %cst_11 [1] : vector<8x16x128xf32> to vector<8x128xf32>
    %c288 = arith.constant 288 : index
    %c0_12 = arith.constant 0 : index
    %33 = vector.load %arg2[%c288, %c0_12] : memref<544x128xbf16, #tpu.memory_space<vmem>>, vector<128x128xbf16>
    %c2 = arith.constant 2 : index
    %c0_13 = arith.constant 0 : index
    %34 = vector.load %arg3[%c2, %c0_13] : memref<24x128xf32, #tpu.memory_space<vmem>>, vector<1x128xf32>
    %35 = arith.truncf %32 : vector<8x128xf32> to vector<8x128xbf16>
    %cst_14 = arith.constant dense<0.000000e+00> : vector<8x128xf32>
    %36 = tpu.matmul %35, %33, %cst_14 {dimension_numbers = #tpu.dot_dimension_numbers<[1], [0], [0], [1], [0, 0, 1, 1], [], []>} : vector<8x128xbf16>, vector<128x128xbf16>, vector<8x128xf32> -> vector<8x128xf32>
    %37 = vector.broadcast %34 : vector<1x128xf32> to vector<8x128xf32>
    %38 = arith.addf %36, %37 : vector<8x128xf32>
    %cst_15 = arith.constant 0.000000e+00 : f32
    %39 = vector.broadcast %cst_15 : f32 to vector<8x128xf32>
    %40 = arith.maximumf %38, %39 : vector<8x128xf32>
    %c416 = arith.constant 416 : index
    %c0_16 = arith.constant 0 : index
    %41 = vector.load %arg2[%c416, %c0_16] : memref<544x128xbf16, #tpu.memory_space<vmem>>, vector<128x128xbf16>
    %c3 = arith.constant 3 : index
    %c0_17 = arith.constant 0 : index
    %42 = vector.load %arg3[%c3, %c0_17] : memref<24x128xf32, #tpu.memory_space<vmem>>, vector<1x128xf32>
    %43 = arith.truncf %40 : vector<8x128xf32> to vector<8x128xbf16>
    %cst_18 = arith.constant dense<0.000000e+00> : vector<8x128xf32>
    %44 = tpu.matmul %43, %41, %cst_18 {dimension_numbers = #tpu.dot_dimension_numbers<[1], [0], [0], [1], [0, 0, 1, 1], [], []>} : vector<8x128xbf16>, vector<128x128xbf16>, vector<8x128xf32> -> vector<8x128xf32>
    %45 = vector.broadcast %42 : vector<1x128xf32> to vector<8x128xf32>
    %46 = arith.addf %44, %45 : vector<8x128xf32>
    %c0_19 = arith.constant 0 : index
    %c0_20 = arith.constant 0 : index
    %47 = vector.load %arg4[%c0_19, %c0_20] : memref<8x128xf32, #tpu.memory_space<vmem>>, vector<8x128xf32>
    tpu.vector_store %arg4[%c0_19, %c0_20], %46 {strides = array<i32>} : memref<8x128xf32, #tpu.memory_space<vmem>>, vector<8x128xf32>,
    return
  }
  func.func @transform_0(%arg0: i32) -> (i32, i32) {
    %c0_i32 = arith.constant 0 : i32
    %c0_i32_0 = arith.constant 0 : i32
    return %arg0, %c0_i32 : i32, i32
  }
  func.func @transform_1(%arg0: i32) -> (i32, i32) {
    %c0_i32 = arith.constant 0 : i32
    %c0_i32_0 = arith.constant 0 : i32
    %c0_i32_1 = arith.constant 0 : i32
    return %c0_i32, %c0_i32_0 : i32, i32
  }
  func.func @transform_2(%arg0: i32) -> (i32, i32) {
    %c0_i32 = arith.constant 0 : i32
    %c0_i32_0 = arith.constant 0 : i32
    %c0_i32_1 = arith.constant 0 : i32
    return %c0_i32, %c0_i32_0 : i32, i32
  }
  func.func @transform_3(%arg0: i32) -> (i32, i32) {
    %c0_i32 = arith.constant 0 : i32
    %c0_i32_0 = arith.constant 0 : i32
    return %arg0, %c0_i32 : i32, i32
  }
}

</mosaic_0001>

<llo_original>
// kernel: forward.1
$region0: #{forward.1}
  #allocation0 [shape = 'u32[]', space=smem, size = 0x4, offset = 0x4, fixed_abs, tag = 'smem constant byte address 0x4 - core index']
  #allocation1 [shape = 'u32[144,128]{1,0:T(1,128)}', space=vmem, size = 0x12000, scoped, tag = 'internal scratch']
  %s0 = inlined_call_operand.vmem [shape: s32[256,1], index: 0, kind: input, shape index: {}]
  %s1 = inlined_call_operand.vmem [shape: bf16[544,128], index: 1, kind: input, shape index: {}]
  %s2 = inlined_call_operand.hbm [shape: f32[24,128], index: 2, kind: input, shape index: {}]
  %s3 = inlined_call_operand.vmem [shape: f32[16,128], index: 3, kind: output, shape index: {}]
  %s4 = sld [smem:[#allocation0]]
  $region49: #{forward.1} parent=0
    _
  %s6 = ssub.s32 1, %s4
  %s7 = scalar_select 0, %s6, %s4
  $region1: #{forward.1} parent=0
    #allocation2 [shape = 'u8[12288]{0}', space=vmem, size = 0x3000, scoped, tag = 'input window, operand 2, single buffered']
    #allocation3 [shape = 's32[2]{0}', space=sflag, size = 0x8, scoped, tag = 'scoped memory for forward.1']
    %8 = vsyncpa [#allocation3], 0
    loop: start=0, step=1, limit=4
    $region2: #{forward.1} parent=1 // loop_pre_header
      _
    $region3: #{forward.1} parent=1 // loop_header
      %s10 = sphi 0, %s14
      %p11 = scmp.ge.s32.totalorder %s10, 4
      %s20 = sphi 0, %s22
      %s23 = sphi 0, %s20
      %s24 = sphi 0, %s23
      %s40 = sphi 0, %s24
      %s44 = sphi 0, %s44
      %s46 = sphi 0, %s44
      %s47 = sphi 0, %s46
      %s61 = sphi 0, %s47
      %s65 = sphi 0, %s65
      %s67 = sphi 0, %s65
      %s68 = sphi 0, %s67
      %s82 = sphi 0, %s68
      %s88 = sphi 0, %s90
      %s91 = sphi 0, %s88
      %s92 = sphi 0, %s91
      %s108 = sphi 0, %s92
    $region4: #{forward.1} parent=1 // loop_header_branch
      %13 = sbr.rel (%p11) target = $region8
    $region5: #{forward.1} parent=1 // loop_body
      %s15 = ssub.s32 %s10, 1
      %s16 = ssub.s32 %s10, 2
      %s17 = sadd.s32 %s10, 1
      %s18 = ssub.s32 %s10, %s17
      %p19 = scmp.eq.s32.totalorder %s18, 0
      %s21 = sadd.s32 %s20, 1
      %s22 = scalar_select %p19, %s20, %s21
      %p25 = pneg %p19
      %p26 = scmp.eq.s32.totalorder %s10, 1
      %p27 = por %p25, %p26
      %p28 = scmp.ne.s32.totalorder %s20, %s23
      %p29 = scmp.eq.s32.totalorder %s10, 0
      %p30 = por %p28, %p29
      %p31 = scmp.ne.s32.totalorder %s20, %s23
      %p32 = scmp.eq.s32.totalorder %s15, 1
      %p33 = por %p31, %p32
      %p34 = scmp.ne.s32.totalorder %s23, %s24
      %p35 = scmp.eq.s32.totalorder %s15, 0
      %p36 = por %p34, %p35
      %p37 = scmp.ne.s32.totalorder %s23, %s24
      %p38 = scmp.eq.s32.totalorder %s16, 1
      %p39 = por %p37, %p38
      %p41 = scmp.ne.s32.totalorder %s24, %s40
      %p42 = scmp.eq.s32.totalorder %s16, 0
      %p43 = por %p41, %p42
      %s45 = sadd.s32 %s44, 1
      %p48 = scmp.eq.s32.totalorder %s10, 1
      %p49 = scmp.ne.s32.totalorder %s44, %s46
      %p50 = scmp.eq.s32.totalorder %s10, 0
      %p51 = por %p49, %p50
      %p52 = scmp.ne.s32.totalorder %s44, %s46
      %p53 = scmp.eq.s32.totalorder %s15, 1
      %p54 = por %p52, %p53
      %p55 = scmp.ne.s32.totalorder %s46, %s47
      %p56 = scmp.eq.s32.totalorder %s15, 0
      %p57 = por %p55, %p56
      %p58 = scmp.ne.s32.totalorder %s46, %s47
      %p59 = scmp.eq.s32.totalorder %s16, 1
      %p60 = por %p58, %p59
      %p62 = scmp.ne.s32.totalorder %s47, %s61
      %p63 = scmp.eq.s32.totalorder %s16, 0
      %p64 = por %p62, %p63
      %s66 = sadd.s32 %s65, 1
      %p69 = scmp.eq.s32.totalorder %s10, 1
      %p70 = scmp.ne.s32.totalorder %s65, %s67
      %p71 = scmp.eq.s32.totalorder %s10, 0
      %p72 = por %p70, %p71
      %p73 = scmp.ne.s32.totalorder %s65, %s67
      %p74 = scmp.eq.s32.totalorder %s15, 1
      %p75 = por %p73, %p74
      %p76 = scmp.ne.s32.totalorder %s67, %s68
      %p77 = scmp.eq.s32.totalorder %s15, 0
      %p78 = por %p76, %p77
      %p79 = scmp.ne.s32.totalorder %s67, %s68
      %p80 = scmp.eq.s32.totalorder %s16, 1
      %p81 = por %p79, %p80
      %p83 = scmp.ne.s32.totalorder %s68, %s82
      %p84 = scmp.eq.s32.totalorder %s16, 0
      %p85 = por %p83, %p84
      %s86 = ssub.s32 %s10, %s17
      %p87 = scmp.eq.s32.totalorder %s86, 0
      %s89 = sadd.s32 %s88, 1
      %s90 = scalar_select %p87, %s88, %s89
      %p93 = pneg %p87
      %p94 = scmp.eq.s32.totalorder %s10, 1
      %p95 = por %p93, %p94
      %p96 = scmp.ne.s32.totalorder %s88, %s91
      %p97 = scmp.eq.s32.totalorder %s10, 0
      %p98 = por %p96, %p97
      %p99 = scmp.ne.s32.totalorder %s88, %s91
      %p100 = scmp.eq.s32.totalorder %s15, 1
      %p101 = por %p99, %p100
      %p102 = scmp.ne.s32.totalorder %s91, %s92
      %p103 = scmp.eq.s32.totalorder %s15, 0
      %p104 = por %p102, %p103
      %p105 = scmp.ne.s32.totalorder %s91, %s92
      %p106 = scmp.eq.s32.totalorder %s16, 1
      %p107 = por %p105, %p106
      %p109 = scmp.ne.s32.totalorder %s92, %s108
      %p110 = scmp.eq.s32.totalorder %s16, 0
      %p111 = por %p109, %p110
      %p112 = scmp.le.s32.totalorder 1, %s10
      %p113 = scmp.lt.s32.totalorder %s10, 3
      %p114 = pnand %p112, %p113
      %p115 = pneg %p114
      // Predicated region
      $region9: #{forward.1} parent=5 // pred_check
        _
      $region10: #{forward.1} parent=5 // pred_check_branch
        %117 = sbr.rel (%p114) target = $region12
      $region11: #{forward.1} parent=5 // pred_region
        %s118 = ssub.s32 %s10, 1
        // Predicated region
        $region13: #{forward.1} parent=11 // pred_check
          %p119 = pneg %p57
        $region14: #{forward.1} parent=11 // pred_check_branch
          %121 = sbr.rel (%p119) target = $region16
        $region15: #{forward.1} parent=11 // pred_region
          _
        $region16: #{forward.1} parent=11 // pred_fallthru
          _
        // Predicated region
        $region17: #{forward.1} parent=11 // pred_check
          %p122 = pneg %p78
        $region18: #{forward.1} parent=11 // pred_check_branch
          %124 = sbr.rel (%p122) target = $region20
        $region19: #{forward.1} parent=11 // pred_region
          %s126 = ssub.s32 384, 384
          %127 = vsyncadd [#allocation3], %s126
          %s128 = sshll.u32 [#allocation2], 4
          %s129 = int_to_ptr.vmem [resolvable:$true] %s128
          %134 = dma.hbm_to_vmem [thread:$0]  %s2, 384, %s129, [#allocation3], 128, 128, 8
        $region20: #{forward.1} parent=11 // pred_fallthru
          _
      $region12: #{forward.1} parent=5 // pred_fallthru
        _
      %p135 = scmp.lt.s32.totalorder %s10, 2
      // Predicated region
      $region21: #{forward.1} parent=5 // pred_check
        %p136 = pneg %p135
      $region22: #{forward.1} parent=5 // pred_check_branch
        %138 = sbr.rel (%p136) target = $region24
      $region23: #{forward.1} parent=5 // pred_region
        // Predicated region
        $region25: #{forward.1} parent=23 // pred_check
          %p139 = pneg %p30
        $region26: #{forward.1} parent=23 // pred_check_branch
          %141 = sbr.rel (%p139) target = $region28
        $region27: #{forward.1} parent=23 // pred_region
          %s142 = smul.u32 16, %s10
          %p143 = scmp.lt.s32.totalorder %s142, 31
          %s144 = scalar_select %p143, %s142, 31
          %s145 = smul.addr %s144, 8
          %s146 = scalar_lea.vmem %s0, %s145
          %s147 = smul.u32 16, %s10
        $region28: #{forward.1} parent=23 // pred_fallthru
          _
      $region24: #{forward.1} parent=5 // pred_fallthru
        _
      %p148 = scmp.le.s32.totalorder 1, %s10
      %p149 = scmp.lt.s32.totalorder %s10, 3
      %p150 = pnand %p148, %p149
      %p151 = pneg %p150
      // Predicated region
      $region29: #{forward.1} parent=5 // pred_check
        _
      $region30: #{forward.1} parent=5 // pred_check_branch
        %153 = sbr.rel (%p150) target = $region32
      $region31: #{forward.1} parent=5 // pred_region
        %s154 = ssub.s32 %s10, 1
        // Predicated region
        $region33: #{forward.1} parent=31 // pred_check
          %p155 = pneg %p78
        $region34: #{forward.1} parent=31 // pred_check_branch
          %157 = sbr.rel (%p155) target = $region36
        $region35: #{forward.1} parent=31 // pred_region
          %158 = dma.done [#allocation3], 384
        $region36: #{forward.1} parent=31 // pred_fallthru
          _
        %s159 = smul.u32 16, %s15
        %p160 = scmp.lt.s32.totalorder %s159, 31
        %s161 = scalar_select %p160, %s159, 31
        %s162 = smul.addr %s161, 8
        %s163 = scalar_lea.vmem %s0, %s162
        %p164 = pneg %p36
        %p165 = pneg %p33
        %p166 = pneg %p57
        %p167 = pneg %p54
        %p168 = pneg %p78
        %p169 = pneg %p75
        %p170 = pneg %p104
        %p171 = pneg %p101
        %p172 = scmp.lt.s32.totalorder %s15, 1
        %s173 = scalar_select %p172, %s15, 1
        %s174 = smul.addr %s173, 8
        %s175 = scalar_lea.vmem %s3, %s174
        %s176 = smul.u32 16, %s15
        %p177 = scmp.lt.s32.totalorder %s176, 31
        %s178 = scalar_select %p177, %s176, 31
        %s179 = smul.addr %s178, 8
        %s180 = scalar_lea.vmem %s0, %s179
        %s181 = smul.u32 16, %s15
        %p182 = scmp.lt.s32.totalorder %s15, 1
        %s183 = scalar_select %p182, %s15, 1
        %s184 = smul.addr %s183, 8
        %s185 = scalar_lea.vmem %s3, %s184
        %v187 = vld [vmem:[%s180] sm:$0xff]
        %v188 = vld [vmem:[%s180 + $0x8] sm:$0xff]
        %v189 = vld [vmem:[%s180 + $0x10] sm:$0xff]
        %v190 = vld [vmem:[%s180 + $0x18] sm:$0xff]
        %v191 = vld [vmem:[%s180 + $0x20] sm:$0xff]
        %v192 = vld [vmem:[%s180 + $0x28] sm:$0xff]
        %v193 = vld [vmem:[%s180 + $0x30] sm:$0xff]
        %v194 = vld [vmem:[%s180 + $0x38] sm:$0xff]
        %v195 = vld [vmem:[%s180 + $0x40] sm:$0xff]
        %v196 = vld [vmem:[%s180 + $0x48] sm:$0xff]
        %v197 = vld [vmem:[%s180 + $0x50] sm:$0xff]
        %v198 = vld [vmem:[%s180 + $0x58] sm:$0xff]
        %v199 = vld [vmem:[%s180 + $0x60] sm:$0xff]
        %v200 = vld [vmem:[%s180 + $0x68] sm:$0xff]
        %v201 = vld [vmem:[%s180 + $0x70] sm:$0xff]
        %v202 = vld [vmem:[%s180 + $0x78] sm:$0xff]
        %v203 = vlaneseq
        %v204 = vand.u32 %v203, 127
        %205 = vset.pattern.permute.xlu0 0
        %206 = vperm.xlu0 %205, %v187
        %v207 = vpop.permute.xlu0 %206
        %208 = vset.pattern.permute.xlu0 0
        %209 = vperm.xlu0 %208, %v188
        %v210 = vpop.permute.xlu0 %209
        %211 = vset.pattern.permute.xlu0 0
        %212 = vperm.xlu0 %211, %v189
        %v213 = vpop.permute.xlu0 %212
        %214 = vset.pattern.permute.xlu0 0
        %215 = vperm.xlu0 %214, %v190
        %v216 = vpop.permute.xlu0 %215
        %217 = vset.pattern.permute.xlu0 0
        %218 = vperm.xlu0 %217, %v191
        %v219 = vpop.permute.xlu0 %218
        %220 = vset.pattern.permute.xlu0 0
        %221 = vperm.xlu0 %220, %v192
        %v222 = vpop.permute.xlu0 %221
        %223 = vset.pattern.permute.xlu0 0
        %224 = vperm.xlu0 %223, %v193
        %v225 = vpop.permute.xlu0 %224
        %226 = vset.pattern.permute.xlu0 0
        %227 = vperm.xlu0 %226, %v194
        %v228 = vpop.permute.xlu0 %227
        %229 = vset.pattern.permute.xlu0 0
        %230 = vperm.xlu0 %229, %v195
        %v231 = vpop.permute.xlu0 %230
        %232 = vset.pattern.permute.xlu0 0
        %233 = vperm.xlu0 %232, %v196
        %v234 = vpop.permute.xlu0 %233
        %235 = vset.pattern.permute.xlu0 0
        %236 = vperm.xlu0 %235, %v197
        %v237 = vpop.permute.xlu0 %236
        %238 = vset.pattern.permute.xlu0 0
        %239 = vperm.xlu0 %238, %v198
        %v240 = vpop.permute.xlu0 %239
        %241 = vset.pattern.permute.xlu0 0
        %242 = vperm.xlu0 %241, %v199
        %v243 = vpop.permute.xlu0 %242
        %244 = vset.pattern.permute.xlu0 0
        %245 = vperm.xlu0 %244, %v200
        %v246 = vpop.permute.xlu0 %245
        %247 = vset.pattern.permute.xlu0 0
        %248 = vperm.xlu0 %247, %v201
        %v249 = vpop.permute.xlu0 %248
        %250 = vset.pattern.permute.xlu0 0
        %251 = vperm.xlu0 %250, %v202
        %v252 = vpop.permute.xlu0 %251
        %vm253 = vcmp.eq.s32.totalorder %v204, %v207
        %vm254 = vcmp.eq.s32.totalorder %v204, %v210
        %vm255 = vcmp.eq.s32.totalorder %v204, %v213
        %vm256 = vcmp.eq.s32.totalorder %v204, %v216
        %vm257 = vcmp.eq.s32.totalorder %v204, %v219
        %vm258 = vcmp.eq.s32.totalorder %v204, %v222
        %vm259 = vcmp.eq.s32.totalorder %v204, %v225
        %vm260 = vcmp.eq.s32.totalorder %v204, %v228
        %vm261 = vcmp.eq.s32.totalorder %v204, %v231
        %vm262 = vcmp.eq.s32.totalorder %v204, %v234
        %vm263 = vcmp.eq.s32.totalorder %v204, %v237
        %vm264 = vcmp.eq.s32.totalorder %v204, %v240
        %vm265 = vcmp.eq.s32.totalorder %v204, %v243
        %vm266 = vcmp.eq.s32.totalorder %v204, %v246
        %vm267 = vcmp.eq.s32.totalorder %v204, %v249
        %vm268 = vcmp.eq.s32.totalorder %v204, %v252
        %v269 = vsel %vm253, 1, 0
        %v270 = vsel %vm254, 1, 0
        %v271 = vsel %vm255, 1, 0
        %v272 = vsel %vm256, 1, 0
        %v273 = vsel %vm257, 1, 0
        %v274 = vsel %vm258, 1, 0
        %v275 = vsel %vm259, 1, 0
        %v276 = vsel %vm260, 1, 0
        %v277 = vsel %vm261, 1, 0
        %v278 = vsel %vm262, 1, 0
        %v279 = vsel %vm263, 1, 0
        %v280 = vsel %vm264, 1, 0
        %v281 = vsel %vm265, 1, 0
        %v282 = vsel %vm266, 1, 0
        %v283 = vsel %vm267, 1, 0
        %v284 = vsel %vm268, 1, 0
        %v285 = vcvt.s32.f32 %v269
        %v286 = vcvt.s32.f32 %v270
        %v287 = vcvt.s32.f32 %v271
        %v288 = vcvt.s32.f32 %v272
        %v289 = vcvt.s32.f32 %v273
        %v290 = vcvt.s32.f32 %v274
        %v291 = vcvt.s32.f32 %v275
        %v292 = vcvt.s32.f32 %v276
        %v293 = vcvt.s32.f32 %v277
        %v294 = vcvt.s32.f32 %v278
        %v295 = vcvt.s32.f32 %v279
        %v296 = vcvt.s32.f32 %v280
        %v297 = vcvt.s32.f32 %v281
        %v298 = vcvt.s32.f32 %v282
        %v299 = vcvt.s32.f32 %v283
        %v300 = vcvt.s32.f32 %v284
        %v301 = vpack.c.bf16 %v286, %v285
        %v302 = vpack.c.bf16 %v288, %v287
        %v303 = vpack.c.bf16 %v290, %v289
        %v304 = vpack.c.bf16 %v292, %v291
        %v305 = vpack.c.bf16 %v294, %v293
        %v306 = vpack.c.bf16 %v296, %v295
        %v307 = vpack.c.bf16 %v298, %v297
        %v308 = vpack.c.bf16 %v300, %v299
        %v309 = vld [vmem:[%s1] sm:$0xf]
        %v310 = vld [vmem:[%s1 + $0x4] sm:$0xf]
        %v311 = vld [vmem:[%s1 + $0x8] sm:$0xf]
        %v312 = vld [vmem:[%s1 + $0xc] sm:$0xf]
        %v313 = vld [vmem:[%s1 + $0x10] sm:$0xf]
        %v314 = vld [vmem:[%s1 + $0x14] sm:$0xf]
        %v315 = vld [vmem:[%s1 + $0x18] sm:$0xf]
        %v316 = vld [vmem:[%s1 + $0x1c] sm:$0xf]
        %v317 = vld [vmem:[%s1 + $0x20] sm:$0xf]
        %v318 = vld [vmem:[%s1 + $0x24] sm:$0xf]
        %v319 = vld [vmem:[%s1 + $0x28] sm:$0xf]
        %v320 = vld [vmem:[%s1 + $0x2c] sm:$0xf]
        %v321 = vld [vmem:[%s1 + $0x30] sm:$0xf]
        %v322 = vld [vmem:[%s1 + $0x34] sm:$0xf]
        %v323 = vld [vmem:[%s1 + $0x38] sm:$0xf]
        %v324 = vld [vmem:[%s1 + $0x3c] sm:$0xf]
        %v325 = vld [vmem:[#allocation2] sm:$0x1]
        %v326 = vlaneseq
        %v327 = vshrl.u32 %v326, 7
        %v328 = vsub.s32 0, %v327
        %v329 = vrot.slane %v325, %v328
        %v346 = vunpack.c.l.b16 %v309
        %v347 = vunpack.c.l.b16 %v310
        %v348 = vunpack.c.l.b16 %v311
        %v349 = vunpack.c.l.b16 %v312
        %v350 = vunpack.c.l.b16 %v313
        %v351 = vunpack.c.l.b16 %v314
        %v352 = vunpack.c.l.b16 %v315
        %v353 = vunpack.c.l.b16 %v316
        %v354 = vunpack.c.l.b16 %v317
        %v355 = vunpack.c.l.b16 %v318
        %v356 = vunpack.c.l.b16 %v319
        %v357 = vunpack.c.l.b16 %v320
        %v358 = vunpack.c.l.b16 %v321
        %v359 = vunpack.c.l.b16 %v322
        %v360 = vunpack.c.l.b16 %v323
        %v361 = vunpack.c.l.b16 %v324
        %v362 = vpack.c.b16 %v347, %v346
        %v363 = vpack.c.b16 %v349, %v348
        %v364 = vpack.c.b16 %v351, %v350
        %v365 = vpack.c.b16 %v353, %v352
        %v366 = vpack.c.b16 %v355, %v354
        %v367 = vpack.c.b16 %v357, %v356
        %v368 = vpack.c.b16 %v359, %v358
        %v369 = vpack.c.b16 %v361, %v360
        %378 = vmatprep.subr.bf16.mxu0 0
        %379 = vmatpush1.bf16.msra.mxu0 %v369
        %380 = vmatprep.subr.bf16.mxu0 0
        %381 = vmatpush1.bf16.msra.mxu0 %v368
        %382 = vmatprep.subr.bf16.mxu0 0
        %383 = vmatpush1.bf16.msra.mxu0 %v367
        %384 = vmatprep.subr.bf16.mxu0 0
        %385 = vmatpush1.bf16.msra.mxu0 %v366
        %386 = vmatprep.subr.bf16.mxu0 0
        %387 = vmatpush1.bf16.msra.mxu0 %v365
        %388 = vmatprep.subr.bf16.mxu0 0
        %389 = vmatpush1.bf16.msra.mxu0 %v364
        %390 = vmatprep.subr.bf16.mxu0 0
        %391 = vmatpush1.bf16.msra.mxu0 %v363
        %392 = vmatprep.subr.bf16.mxu0 0
        %393 = vmatpush1.bf16.msra.mxu0 %v362
        %394 = vmatprep.subr.bf16.mxu0 0
        %395 = vmatpush2.bf16.msra.mxu0 0
        %396 = vmatprep.subr.bf16.mxu0 0
        %397 = vmatpush2.bf16.msra.mxu0 0
        %398 = vmatprep.subr.bf16.mxu0 0
        %399 = vmatpush2.bf16.msra.mxu0 0
        %400 = vmatprep.subr.bf16.mxu0 0
        %401 = vmatpush2.bf16.msra.mxu0 0
        %402 = vmatprep.subr.bf16.mxu0 0
        %403 = vmatpush2.bf16.msra.mxu0 0
        %404 = vmatprep.subr.bf16.mxu0 0
        %405 = vmatpush2.bf16.msra.mxu0 0
        %406 = vmatprep.subr.bf16.mxu0 0
        %407 = vmatpush2.bf16.msra.mxu0 0
        %408 = vmatprep.subr.bf16.mxu0 0
        %409 = vmatpush2.bf16.msra.mxu0 0
        %410 = vmatprep.mubr.bf16.mxu0 0
        %411 = vmatmul.mubr.bf16.gmra.mxu0 %v301
        %v412 = vpop.f32.mrf.mxu0
        %v413 = vadd.f32 %v329, %v412
        %v414 = vpop.f32.mrf.mxu0
        %v415 = vpop.f32.mrf.mxu0
        %v416 = vadd.f32 %v329, %v415
        %v417 = vpop.f32.mrf.mxu0
        %418 = vmatprep.mubr.bf16.mxu0 0
        %419 = vmatmul.mubr.bf16.gmra.mxu0 %v302
        %v420 = vpop.f32.mrf.mxu0
        %v421 = vadd.f32 %v329, %v420
        %v422 = vpop.f32.mrf.mxu0
        %v423 = vpop.f32.mrf.mxu0
        %v424 = vadd.f32 %v329, %v423
        %v425 = vpop.f32.mrf.mxu0
        %426 = vmatprep.mubr.bf16.mxu0 0
        %427 = vmatmul.mubr.bf16.gmra.mxu0 %v303
        %v428 = vpop.f32.mrf.mxu0
        %v429 = vadd.f32 %v329, %v428
        %v430 = vpop.f32.mrf.mxu0
        %v431 = vpop.f32.mrf.mxu0
        %v432 = vadd.f32 %v329, %v431
        %v433 = vpop.f32.mrf.mxu0
        %434 = vmatprep.mubr.bf16.mxu0 0
        %435 = vmatmul.mubr.bf16.gmra.mxu0 %v304
        %v436 = vpop.f32.mrf.mxu0
        %v437 = vadd.f32 %v329, %v436
        %v438 = vpop.f32.mrf.mxu0
        %v439 = vpop.f32.mrf.mxu0
        %v440 = vadd.f32 %v329, %v439
        %v441 = vpop.f32.mrf.mxu0
        %442 = vmatprep.mubr.bf16.mxu0 0
        %443 = vmatmul.mubr.bf16.gmra.mxu0 %v305
        %v444 = vpop.f32.mrf.mxu0
        %v445 = vadd.f32 %v329, %v444
        %v446 = vpop.f32.mrf.mxu0
        %v447 = vpop.f32.mrf.mxu0
        %v448 = vadd.f32 %v329, %v447
        %v449 = vpop.f32.mrf.mxu0
        %450 = vmatprep.mubr.bf16.mxu0 0
        %451 = vmatmul.mubr.bf16.gmra.mxu0 %v306
        %v452 = vpop.f32.mrf.mxu0
        %v453 = vadd.f32 %v329, %v452
        %v454 = vpop.f32.mrf.mxu0
        %v455 = vpop.f32.mrf.mxu0
        %v456 = vadd.f32 %v329, %v455
        %v457 = vpop.f32.mrf.mxu0
        %458 = vmatprep.mubr.bf16.mxu0 0
        %459 = vmatmul.mubr.bf16.gmra.mxu0 %v307
        %v460 = vpop.f32.mrf.mxu0
        %v461 = vadd.f32 %v329, %v460
        %v462 = vpop.f32.mrf.mxu0
        %v463 = vpop.f32.mrf.mxu0
        %v464 = vadd.f32 %v329, %v463
        %v465 = vpop.f32.mrf.mxu0
        %466 = vmatprep.mubr.bf16.mxu0 0
        %467 = vmatmul.mubr.bf16.gmra.mxu0 %v308
        %v468 = vpop.f32.mrf.mxu0
        %v469 = vadd.f32 %v329, %v468
        %v470 = vpop.f32.mrf.mxu0
        %v471 = vpop.f32.mrf.mxu0
        %v472 = vadd.f32 %v329, %v471
        %v473 = vpop.f32.mrf.mxu0
        %474 = vdwg.mxu0
        %v475 = vmax.f32 %v413, 0.0
        %v476 = vmax.f32 %v416, 0.0
        %v477 = vmax.f32 %v421, 0.0
        %v478 = vmax.f32 %v424, 0.0
        %v479 = vmax.f32 %v429, 0.0
        %v480 = vmax.f32 %v432, 0.0
        %v481 = vmax.f32 %v437, 0.0
        %v482 = vmax.f32 %v440, 0.0
        %v483 = vmax.f32 %v445, 0.0
        %v484 = vmax.f32 %v448, 0.0
        %v485 = vmax.f32 %v453, 0.0
        %v486 = vmax.f32 %v456, 0.0
        %v487 = vmax.f32 %v461, 0.0
        %v488 = vmax.f32 %v464, 0.0
        %v489 = vmax.f32 %v469, 0.0
        %v490 = vmax.f32 %v472, 0.0
        %v491 = vrot.slane %v475, 1
        %v492 = vrot.slane %v476, 1
        %v493 = vrot.slane %v477, 1
        %v494 = vrot.slane %v478, 1
        %v495 = vrot.slane %v479, 1
        %v496 = vrot.slane %v480, 1
        %v497 = vrot.slane %v481, 1
        %v498 = vrot.slane %v482, 1
        %v499 = vrot.slane %v483, 1
        %v500 = vrot.slane %v484, 1
        %v501 = vrot.slane %v485, 1
        %v502 = vrot.slane %v486, 1
        %v503 = vrot.slane %v487, 1
        %v504 = vrot.slane %v488, 1
        %v505 = vrot.slane %v489, 1
        %v506 = vrot.slane %v490, 1
        %v507 = vlaneseq
        %v508 = vshrl.u32 %v507, 7
        %vm509 = vcmp.lt.s32.totalorder %v508, 7
        %v510 = vsel %vm509, %v505, %v506
        %v511 = vsel %vm509, %v504, %v505
        %v512 = vsel %vm509, %v503, %v504
        %v513 = vsel %vm509, %v502, %v503
        %v514 = vsel %vm509, %v501, %v502
        %v515 = vsel %vm509, %v500, %v501
        %v516 = vsel %vm509, %v499, %v500
        %v517 = vsel %vm509, %v498, %v499
        %v518 = vsel %vm509, %v497, %v498
        %v519 = vsel %vm509, %v496, %v497
        %v520 = vsel %vm509, %v495, %v496
        %v521 = vsel %vm509, %v494, %v495
        %v522 = vsel %vm509, %v493, %v494
        %v523 = vsel %vm509, %v492, %v493
        %v524 = vsel %vm509, %v491, %v492
        %v525 = vsel %vm509, %v506, %v491
        %v526 = vrot.slane %v475, 2
        %v527 = vrot.slane %v476, 2
        %v528 = vrot.slane %v477, 2
        %v529 = vrot.slane %v478, 2
        %v530 = vrot.slane %v479, 2
        %v531 = vrot.slane %v480, 2
        %v532 = vrot.slane %v481, 2
        %v533 = vrot.slane %v482, 2
        %v534 = vrot.slane %v483, 2
        %v535 = vrot.slane %v484, 2
        %v536 = vrot.slane %v485, 2
        %v537 = vrot.slane %v486, 2
        %v538 = vrot.slane %v487, 2
        %v539 = vrot.slane %v488, 2
        %v540 = vrot.slane %v489, 2
        %v541 = vrot.slane %v490, 2
        %vm542 = vcmp.lt.s32.totalorder %v508, 6
        %v543 = vsel %vm542, %v540, %v541
        %v544 = vsel %vm542, %v539, %v540
        %v545 = vsel %vm542, %v538, %v539
        %v546 = vsel %vm542, %v537, %v538
        %v547 = vsel %vm542, %v536, %v537
        %v548 = vsel %vm542, %v535, %v536
        %v549 = vsel %vm542, %v534, %v535
        %v550 = vsel %vm542, %v533, %v534
        %v551 = vsel %vm542, %v532, %v533
        %v552 = vsel %vm542, %v531, %v532
        %v553 = vsel %vm542, %v530, %v531
        %v554 = vsel %vm542, %v529, %v530
        %v555 = vsel %vm542, %v528, %v529
        %v556 = vsel %vm542, %v527, %v528
        %v557 = vsel %vm542, %v526, %v527
        %v558 = vsel %vm542, %v541, %v526
        %v559 = vrot.slane %v475, 3
        %v560 = vrot.slane %v476, 3
        %v561 = vrot.slane %v477, 3
        %v562 = vrot.slane %v478, 3
        %v563 = vrot.slane %v479, 3
        %v564 = vrot.slane %v480, 3
        %v565 = vrot.slane %v481, 3
        %v566 = vrot.slane %v482, 3
        %v567 = vrot.slane %v483, 3
        %v568 = vrot.slane %v484, 3
        %v569 = vrot.slane %v485, 3
        %v570 = vrot.slane %v486, 3
        %v571 = vrot.slane %v487, 3
        %v572 = vrot.slane %v488, 3
        %v573 = vrot.slane %v489, 3
        %v574 = vrot.slane %v490, 3
        %vm575 = vcmp.lt.s32.totalorder %v508, 5
        %v576 = vsel %vm575, %v573, %v574
        %v577 = vsel %vm575, %v572, %v573
        %v578 = vsel %vm575, %v571, %v572
        %v579 = vsel %vm575, %v570, %v571
        %v580 = vsel %vm575, %v569, %v570
        %v581 = vsel %vm575, %v568, %v569
        %v582 = vsel %vm575, %v567, %v568
        %v583 = vsel %vm575, %v566, %v567
        %v584 = vsel %vm575, %v565, %v566
        %v585 = vsel %vm575, %v564, %v565
        %v586 = vsel %vm575, %v563, %v564
        %v587 = vsel %vm575, %v562, %v563
        %v588 = vsel %vm575, %v561, %v562
        %v589 = vsel %vm575, %v560, %v561
        %v590 = vsel %vm575, %v559, %v560
        %v591 = vsel %vm575, %v574, %v559
        %v592 = vrot.slane %v475, 4
        %v593 = vrot.slane %v476, 4
        %v594 = vrot.slane %v477, 4
        %v595 = vrot.slane %v478, 4
        %v596 = vrot.slane %v479, 4
        %v597 = vrot.slane %v480, 4
        %v598 = vrot.slane %v481, 4
        %v599 = vrot.slane %v482, 4
        %v600 = vrot.slane %v483, 4
        %v601 = vrot.slane %v484, 4
        %v602 = vrot.slane %v485, 4
        %v603 = vrot.slane %v486, 4
        %v604 = vrot.slane %v487, 4
        %v605 = vrot.slane %v488, 4
        %v606 = vrot.slane %v489, 4
        %v607 = vrot.slane %v490, 4
        %vm608 = vcmp.lt.s32.totalorder %v508, 4
        %v609 = vsel %vm608, %v606, %v607
        %v610 = vsel %vm608, %v605, %v606
        %v611 = vsel %vm608, %v604, %v605
        %v612 = vsel %vm608, %v603, %v604
        %v613 = vsel %vm608, %v602, %v603
        %v614 = vsel %vm608, %v601, %v602
        %v615 = vsel %vm608, %v600, %v601
        %v616 = vsel %vm608, %v599, %v600
        %v617 = vsel %vm608, %v598, %v599
        %v618 = vsel %vm608, %v597, %v598
        %v619 = vsel %vm608, %v596, %v597
        %v620 = vsel %vm608, %v595, %v596
        %v621 = vsel %vm608, %v594, %v595
        %v622 = vsel %vm608, %v593, %v594
        %v623 = vsel %vm608, %v592, %v593
        %v624 = vsel %vm608, %v607, %v592
        %641 = vrot.lane.b32.xlu0 %v524, 32
        %v642 = vpop.permute.xlu0 %641
        %643 = vrot.lane.b32.xlu0 %v523, 32
        %v644 = vpop.permute.xlu0 %643
        %645 = vrot.lane.b32.xlu0 %v522, 32
        %v646 = vpop.permute.xlu0 %645
        %647 = vrot.lane.b32.xlu0 %v521, 32
        %v648 = vpop.permute.xlu0 %647
        %649 = vrot.lane.b32.xlu0 %v520, 32
        %v650 = vpop.permute.xlu0 %649
        %651 = vrot.lane.b32.xlu0 %v519, 32
        %v652 = vpop.permute.xlu0 %651
        %653 = vrot.lane.b32.xlu0 %v518, 32
        %v654 = vpop.permute.xlu0 %653
        %655 = vrot.lane.b32.xlu0 %v517, 32
        %v656 = vpop.permute.xlu0 %655
        %657 = vrot.lane.b32.xlu0 %v516, 32
        %v658 = vpop.permute.xlu0 %657
        %659 = vrot.lane.b32.xlu0 %v515, 32
        %v660 = vpop.permute.xlu0 %659
        %661 = vrot.lane.b32.xlu0 %v514, 32
        %v662 = vpop.permute.xlu0 %661
        %663 = vrot.lane.b32.xlu0 %v513, 32
        %v664 = vpop.permute.xlu0 %663
        %665 = vrot.lane.b32.xlu0 %v512, 32
        %v666 = vpop.permute.xlu0 %665
        %667 = vrot.lane.b32.xlu0 %v511, 32
        %v668 = vpop.permute.xlu0 %667
        %669 = vrot.lane.b32.xlu0 %v510, 32
        %v670 = vpop.permute.xlu0 %669
        %671 = vrot.lane.b32.xlu0 %v525, 32
        %v672 = vpop.permute.xlu0 %671
        %705 = vrot.lane.b32.xlu0 %v557, 64
        %v706 = vpop.permute.xlu0 %705
        %707 = vrot.lane.b32.xlu0 %v556, 64
        %v708 = vpop.permute.xlu0 %707
        %709 = vrot.lane.b32.xlu0 %v555, 64
        %v710 = vpop.permute.xlu0 %709
        %711 = vrot.lane.b32.xlu0 %v554, 64
        %v712 = vpop.permute.xlu0 %711
        %713 = vrot.lane.b32.xlu0 %v553, 64
        %v714 = vpop.permute.xlu0 %713
        %715 = vrot.lane.b32.xlu0 %v552, 64
        %v716 = vpop.permute.xlu0 %715
        %717 = vrot.lane.b32.xlu0 %v551, 64
        %v718 = vpop.permute.xlu0 %717
        %719 = vrot.lane.b32.xlu0 %v550, 64
        %v720 = vpop.permute.xlu0 %719
        %721 = vrot.lane.b32.xlu0 %v549, 64
        %v722 = vpop.permute.xlu0 %721
        %723 = vrot.lane.b32.xlu0 %v548, 64
        %v724 = vpop.permute.xlu0 %723
        %725 = vrot.lane.b32.xlu0 %v547, 64
        %v726 = vpop.permute.xlu0 %725
        %727 = vrot.lane.b32.xlu0 %v546, 64
        %v728 = vpop.permute.xlu0 %727
        %729 = vrot.lane.b32.xlu0 %v545, 64
        %v730 = vpop.permute.xlu0 %729
        %731 = vrot.lane.b32.xlu0 %v544, 64
        %v732 = vpop.permute.xlu0 %731
        %733 = vrot.lane.b32.xlu0 %v543, 64
        %v734 = vpop.permute.xlu0 %733
        %735 = vrot.lane.b32.xlu0 %v558, 64
        %v736 = vpop.permute.xlu0 %735
        %769 = vrot.lane.b32.xlu0 %v590, 96
        %v770 = vpop.permute.xlu0 %769
        %771 = vrot.lane.b32.xlu0 %v589, 96
        %v772 = vpop.permute.xlu0 %771
        %773 = vrot.lane.b32.xlu0 %v588, 96
        %v774 = vpop.permute.xlu0 %773
        %775 = vrot.lane.b32.xlu0 %v587, 96
        %v776 = vpop.permute.xlu0 %775
        %777 = vrot.lane.b32.xlu0 %v586, 96
        %v778 = vpop.permute.xlu0 %777
        %779 = vrot.lane.b32.xlu0 %v585, 96
        %v780 = vpop.permute.xlu0 %779
        %781 = vrot.lane.b32.xlu0 %v584, 96
        %v782 = vpop.permute.xlu0 %781
        %783 = vrot.lane.b32.xlu0 %v583, 96
        %v784 = vpop.permute.xlu0 %783
        %785 = vrot.lane.b32.xlu0 %v582, 96
        %v786 = vpop.permute.xlu0 %785
        %787 = vrot.lane.b32.xlu0 %v581, 96
        %v788 = vpop.permute.xlu0 %787
        %789 = vrot.lane.b32.xlu0 %v580, 96
        %v790 = vpop.permute.xlu0 %789
        %791 = vrot.lane.b32.xlu0 %v579, 96
        %v792 = vpop.permute.xlu0 %791
        %793 = vrot.lane.b32.xlu0 %v578, 96
        %v794 = vpop.permute.xlu0 %793
        %795 = vrot.lane.b32.xlu0 %v577, 96
        %v796 = vpop.permute.xlu0 %795
        %797 = vrot.lane.b32.xlu0 %v576, 96
        %v798 = vpop.permute.xlu0 %797
        %799 = vrot.lane.b32.xlu0 %v591, 96
        %v800 = vpop.permute.xlu0 %799
        %vm817 = vcmask 261120
        %v818 = vsel %vm817, %v475, %v642
        %v819 = vsel %vm817, %v476, %v644
        %v820 = vsel %vm817, %v477, %v646
        %v821 = vsel %vm817, %v478, %v648
        %v822 = vsel %vm817, %v479, %v650
        %v823 = vsel %vm817, %v480, %v652
        %v824 = vsel %vm817, %v481, %v654
        %v825 = vsel %vm817, %v482, %v656
        %v826 = vsel %vm817, %v483, %v658
        %v827 = vsel %vm817, %v484, %v660
        %v828 = vsel %vm817, %v485, %v662
        %v829 = vsel %vm817, %v486, %v664
        %v830 = vsel %vm817, %v487, %v666
        %v831 = vsel %vm817, %v488, %v668
        %v832 = vsel %vm817, %v489, %v670
        %v833 = vsel %vm817, %v490, %v672
        %vm834 = vcmask 523264
        %v835 = vsel %vm834, %v818, %v706
        %v836 = vsel %vm834, %v819, %v708
        %v837 = vsel %vm834, %v820, %v710
        %v838 = vsel %vm834, %v821, %v712
        %v839 = vsel %vm834, %v822, %v714
        %v840 = vsel %vm834, %v823, %v716
        %v841 = vsel %vm834, %v824, %v718
        %v842 = vsel %vm834, %v825, %v720
        %v843 = vsel %vm834, %v826, %v722
        %v844 = vsel %vm834, %v827, %v724
        %v845 = vsel %vm834, %v828, %v726
        %v846 = vsel %vm834, %v829, %v728
        %v847 = vsel %vm834, %v830, %v730
        %v848 = vsel %vm834, %v831, %v732
        %v849 = vsel %vm834, %v832, %v734
        %v850 = vsel %vm834, %v833, %v736
        %vm851 = vcmask 785408
        %v852 = vsel %vm851, %v835, %v770
        %v853 = vsel %vm851, %v836, %v772
        %v854 = vsel %vm851, %v837, %v774
        %v855 = vsel %vm851, %v838, %v776
        %v856 = vsel %vm851, %v839, %v778
        %v857 = vsel %vm851, %v840, %v780
        %v858 = vsel %vm851, %v841, %v782
        %v859 = vsel %vm851, %v842, %v784
        %v860 = vsel %vm851, %v843, %v786
        %v861 = vsel %vm851, %v844, %v788
        %v862 = vsel %vm851, %v845, %v790
        %v863 = vsel %vm851, %v846, %v792
        %v864 = vsel %vm851, %v847, %v794
        %v865 = vsel %vm851, %v848, %v796
        %v866 = vsel %vm851, %v849, %v798
        %v867 = vsel %vm851, %v850, %v800
        %v868 = vpack.c.bf16 %v853, %v852
        %v869 = vpack.c.bf16 %v622, %v623
        %v870 = vpack.c.bf16 %v855, %v854
        %v871 = vpack.c.bf16 %v620, %v621
        %v872 = vpack.c.bf16 %v857, %v856
        %v873 = vpack.c.bf16 %v618, %v619
        %v874 = vpack.c.bf16 %v859, %v858
        %v875 = vpack.c.bf16 %v616, %v617
        %v876 = vpack.c.bf16 %v861, %v860
        %v877 = vpack.c.bf16 %v614, %v615
        %v878 = vpack.c.bf16 %v863, %v862
        %v879 = vpack.c.bf16 %v612, %v613
        %v880 = vpack.c.bf16 %v865, %v864
        %v881 = vpack.c.bf16 %v610, %v611
        %v882 = vpack.c.bf16 %v867, %v866
        %v883 = vpack.c.bf16 %v624, %v609
        %v884 = vld [vmem:[%s1 + $0x40] sm:$0xf]
        %v885 = vld [vmem:[%s1 + $0x44] sm:$0xf]
        %v886 = vld [vmem:[%s1 + $0x48] sm:$0xf]
        %v887 = vld [vmem:[%s1 + $0x4c] sm:$0xf]
        %v888 = vld [vmem:[%s1 + $0x50] sm:$0xf]
        %v889 = vld [vmem:[%s1 + $0x54] sm:$0xf]
        %v890 = vld [vmem:[%s1 + $0x58] sm:$0xf]
        %v891 = vld [vmem:[%s1 + $0x5c] sm:$0xf]
        %v892 = vld [vmem:[%s1 + $0x60] sm:$0xf]
        %v893 = vld [vmem:[%s1 + $0x64] sm:$0xf]
        %v894 = vld [vmem:[%s1 + $0x68] sm:$0xf]
        %v895 = vld [vmem:[%s1 + $0x6c] sm:$0xf]
        %v896 = vld [vmem:[%s1 + $0x70] sm:$0xf]
        %v897 = vld [vmem:[%s1 + $0x74] sm:$0xf]
        %v898 = vld [vmem:[%s1 + $0x78] sm:$0xf]
        %v899 = vld [vmem:[%s1 + $0x7c] sm:$0xf]
        %v900 = vld [vmem:[%s1 + $0x80] sm:$0xf]
        %v901 = vld [vmem:[%s1 + $0x84] sm:$0xf]
        %v902 = vld [vmem:[%s1 + $0x88] sm:$0xf]
        %v903 = vld [vmem:[%s1 + $0x8c] sm:$0xf]
        %v904 = vld [vmem:[#allocation2 + $0x1] sm:$0x1]
        %v905 = vlaneseq
        %v906 = vshrl.u32 %v905, 7
        %v907 = vsub.s32 0, %v906
        %v908 = vrot.slane %v904, %v907
        %v929 = vunpack.c.l.b16 %v884
        %v930 = vunpack.c.l.b16 %v885
        %v931 = vunpack.c.l.b16 %v886
        %v932 = vunpack.c.l.b16 %v887
        %v933 = vunpack.c.l.b16 %v888
        %v934 = vunpack.c.l.b16 %v889
        %v935 = vunpack.c.l.b16 %v890
        %v936 = vunpack.c.l.b16 %v891
        %v937 = vunpack.c.l.b16 %v892
        %v938 = vunpack.c.l.b16 %v893
        %v939 = vunpack.c.l.b16 %v894
        %v940 = vunpack.c.l.b16 %v895
        %v941 = vunpack.c.l.b16 %v896
        %v942 = vunpack.c.l.b16 %v897
        %v943 = vunpack.c.l.b16 %v898
        %v944 = vunpack.c.l.b16 %v899
        %v945 = vunpack.c.l.b16 %v900
        %v946 = vunpack.c.l.b16 %v901
        %v947 = vunpack.c.l.b16 %v902
        %v948 = vunpack.c.l.b16 %v903
        %v949 = vpack.c.b16 %v930, %v929
        %v950 = vpack.c.b16 %v932, %v931
        %v951 = vpack.c.b16 %v934, %v933
        %v952 = vpack.c.b16 %v936, %v935
        %v953 = vpack.c.b16 %v938, %v937
        %v954 = vpack.c.b16 %v940, %v939
        %v955 = vpack.c.b16 %v942, %v941
        %v956 = vpack.c.b16 %v944, %v943
        %v957 = vpack.c.b16 %v946, %v945
        %v958 = vpack.c.b16 %v948, %v947
        %v970 = vsel %vm817, %v869, 0
        %v973 = vsel %vm817, %v871, 0
        %v976 = vsel %vm817, %v873, 0
        %v979 = vsel %vm817, %v875, 0
        %v982 = vsel %vm817, %v877, 0
        %v985 = vsel %vm817, %v879, 0
        %v988 = vsel %vm817, %v881, 0
        %v991 = vsel %vm817, %v883, 0
        %993 = vmatprep.subr.bf16.mxu0 0
        %994 = vmatpush1.bf16.msra.mxu0 %v956
        %995 = vmatprep.subr.bf16.mxu0 0
        %996 = vmatpush1.bf16.msra.mxu0 %v955
        %997 = vmatprep.subr.bf16.mxu0 0
        %998 = vmatpush1.bf16.msra.mxu0 %v954
        %999 = vmatprep.subr.bf16.mxu0 0
        %1000 = vmatpush1.bf16.msra.mxu0 %v953
        %1001 = vmatprep.subr.bf16.mxu0 0
        %1002 = vmatpush1.bf16.msra.mxu0 %v952
        %1003 = vmatprep.subr.bf16.mxu0 0
        %1004 = vmatpush1.bf16.msra.mxu0 %v951
        %1005 = vmatprep.subr.bf16.mxu0 0
        %1006 = vmatpush1.bf16.msra.mxu0 %v950
        %1007 = vmatprep.subr.bf16.mxu0 0
        %1008 = vmatpush1.bf16.msra.mxu0 %v949
        %1009 = vmatprep.subr.bf16.mxu0 0
        %1010 = vmatpush2.bf16.msra.mxu0 0
        %1011 = vmatprep.subr.bf16.mxu0 0
        %1012 = vmatpush2.bf16.msra.mxu0 0
        %1013 = vmatprep.subr.bf16.mxu0 0
        %1014 = vmatpush2.bf16.msra.mxu0 0
        %1015 = vmatprep.subr.bf16.mxu0 0
        %1016 = vmatpush2.bf16.msra.mxu0 0
        %1017 = vmatprep.subr.bf16.mxu0 0
        %1018 = vmatpush2.bf16.msra.mxu0 0
        %1019 = vmatprep.subr.bf16.mxu0 0
        %1020 = vmatpush2.bf16.msra.mxu0 0
        %1021 = vmatprep.subr.bf16.mxu0 0
        %1022 = vmatpush2.bf16.msra.mxu0 %v958
        %1023 = vmatprep.subr.bf16.mxu0 0
        %1024 = vmatpush2.bf16.msra.mxu0 %v957
        %1025 = vmatprep.mubr.bf16.mxu0 %v970
        %1026 = vmatmul.mubr.bf16.gmra.mxu0 %v868
        %v1027 = vpop.f32.mrf.mxu0
        %v1028 = vadd.f32 %v908, %v1027
        %v1029 = vpop.f32.mrf.mxu0
        %v1030 = vpop.f32.mrf.mxu0
        %v1031 = vadd.f32 %v908, %v1030
        %v1032 = vpop.f32.mrf.mxu0
        %1033 = vmatprep.mubr.bf16.mxu0 %v973
        %1034 = vmatmul.mubr.bf16.gmra.mxu0 %v870
        %v1035 = vpop.f32.mrf.mxu0
        %v1036 = vadd.f32 %v908, %v1035
        %v1037 = vpop.f32.mrf.mxu0
        %v1038 = vpop.f32.mrf.mxu0
        %v1039 = vadd.f32 %v908, %v1038
        %v1040 = vpop.f32.mrf.mxu0
        %1041 = vmatprep.mubr.bf16.mxu0 %v976
        %1042 = vmatmul.mubr.bf16.gmra.mxu0 %v872
        %v1043 = vpop.f32.mrf.mxu0
        %v1044 = vadd.f32 %v908, %v1043
        %v1045 = vpop.f32.mrf.mxu0
        %v1046 = vpop.f32.mrf.mxu0
        %v1047 = vadd.f32 %v908, %v1046
        %v1048 = vpop.f32.mrf.mxu0
        %1049 = vmatprep.mubr.bf16.mxu0 %v979
        %1050 = vmatmul.mubr.bf16.gmra.mxu0 %v874
        %v1051 = vpop.f32.mrf.mxu0
        %v1052 = vadd.f32 %v908, %v1051
        %v1053 = vpop.f32.mrf.mxu0
        %v1054 = vpop.f32.mrf.mxu0
        %v1055 = vadd.f32 %v908, %v1054
        %v1056 = vpop.f32.mrf.mxu0
        %1057 = vmatprep.mubr.bf16.mxu0 %v982
        %1058 = vmatmul.mubr.bf16.gmra.mxu0 %v876
        %v1059 = vpop.f32.mrf.mxu0
        %v1060 = vadd.f32 %v908, %v1059
        %v1061 = vpop.f32.mrf.mxu0
        %v1062 = vpop.f32.mrf.mxu0
        %v1063 = vadd.f32 %v908, %v1062
        %v1064 = vpop.f32.mrf.mxu0
        %1065 = vmatprep.mubr.bf16.mxu0 %v985
        %1066 = vmatmul.mubr.bf16.gmra.mxu0 %v878
        %v1067 = vpop.f32.mrf.mxu0
        %v1068 = vadd.f32 %v908, %v1067
        %v1069 = vpop.f32.mrf.mxu0
        %v1070 = vpop.f32.mrf.mxu0
        %v1071 = vadd.f32 %v908, %v1070
        %v1072 = vpop.f32.mrf.mxu0
        %1073 = vmatprep.mubr.bf16.mxu0 %v988
        %1074 = vmatmul.mubr.bf16.gmra.mxu0 %v880
        %v1075 = vpop.f32.mrf.mxu0
        %v1076 = vadd.f32 %v908, %v1075
        %v1077 = vpop.f32.mrf.mxu0
        %v1078 = vpop.f32.mrf.mxu0
        %v1079 = vadd.f32 %v908, %v1078
        %v1080 = vpop.f32.mrf.mxu0
        %1081 = vmatprep.mubr.bf16.mxu0 %v991
        %1082 = vmatmul.mubr.bf16.gmra.mxu0 %v882
        %v1083 = vpop.f32.mrf.mxu0
        %v1084 = vadd.f32 %v908, %v1083
        %v1085 = vpop.f32.mrf.mxu0
        %v1086 = vpop.f32.mrf.mxu0
        %v1087 = vadd.f32 %v908, %v1086
        %v1088 = vpop.f32.mrf.mxu0
        %1089 = vdwg.mxu0
        %v1090 = vmax.f32 %v1028, 0.0
        %v1091 = vmax.f32 %v1031, 0.0
        %v1092 = vmax.f32 %v1036, 0.0
        %v1093 = vmax.f32 %v1039, 0.0
        %v1094 = vmax.f32 %v1044, 0.0
        %v1095 = vmax.f32 %v1047, 0.0
        %v1096 = vmax.f32 %v1052, 0.0
        %v1097 = vmax.f32 %v1055, 0.0
        %v1098 = vmax.f32 %v1060, 0.0
        %v1099 = vmax.f32 %v1063, 0.0
        %v1100 = vmax.f32 %v1068, 0.0
        %v1101 = vmax.f32 %v1071, 0.0
        %v1102 = vmax.f32 %v1076, 0.0
        %v1103 = vmax.f32 %v1079, 0.0
        %v1104 = vmax.f32 %v1084, 0.0
        %v1105 = vmax.f32 %v1087, 0.0
        %v1106 = vld [vmem:[#allocation2 + $0x8] sm:$0xff]
        %v1107 = vld [vmem:[#allocation2 + $0x10] sm:$0xff]
        %v1108 = vmul.f32 %v1090, %v1106
        %v1109 = vmul.f32 %v1091, %v1107
        %v1110 = vmul.f32 %v1092, %v1106
        %v1111 = vmul.f32 %v1093, %v1107
        %v1112 = vmul.f32 %v1094, %v1106
        %v1113 = vmul.f32 %v1095, %v1107
        %v1114 = vmul.f32 %v1096, %v1106
        %v1115 = vmul.f32 %v1097, %v1107
        %v1116 = vmul.f32 %v1098, %v1106
        %v1117 = vmul.f32 %v1099, %v1107
        %v1118 = vmul.f32 %v1100, %v1106
        %v1119 = vmul.f32 %v1101, %v1107
        %v1120 = vmul.f32 %v1102, %v1106
        %v1121 = vmul.f32 %v1103, %v1107
        %v1122 = vmul.f32 %v1104, %v1106
        %v1123 = vmul.f32 %v1105, %v1107
        %v1124 = vmax.f32 %v1108, %v1109
        %v1125 = vrot.slane %v1124, 4
        %v1126 = vmax.f32 %v1124, %v1125
        %v1127 = vrot.slane %v1126, 2
        %v1128 = vmax.f32 %v1126, %v1127
        %v1129 = vrot.slane %v1128, 1
        %v1130 = vmax.f32 %v1128, %v1129
        %v1131 = vmax.f32 %v1110, %v1111
        %v1132 = vrot.slane %v1131, 4
        %v1133 = vmax.f32 %v1131, %v1132
        %v1134 = vrot.slane %v1133, 2
        %v1135 = vmax.f32 %v1133, %v1134
        %v1136 = vrot.slane %v1135, 1
        %v1137 = vmax.f32 %v1135, %v1136
        %v1138 = vmax.f32 %v1112, %v1113
        %v1139 = vrot.slane %v1138, 4
        %v1140 = vmax.f32 %v1138, %v1139
        %v1141 = vrot.slane %v1140, 2
        %v1142 = vmax.f32 %v1140, %v1141
        %v1143 = vrot.slane %v1142, 1
        %v1144 = vmax.f32 %v1142, %v1143
        %v1145 = vmax.f32 %v1114, %v1115
        %v1146 = vrot.slane %v1145, 4
        %v1147 = vmax.f32 %v1145, %v1146
        %v1148 = vrot.slane %v1147, 2
        %v1149 = vmax.f32 %v1147, %v1148
        %v1150 = vrot.slane %v1149, 1
        %v1151 = vmax.f32 %v1149, %v1150
        %v1152 = vmax.f32 %v1116, %v1117
        %v1153 = vrot.slane %v1152, 4
        %v1154 = vmax.f32 %v1152, %v1153
        %v1155 = vrot.slane %v1154, 2
        %v1156 = vmax.f32 %v1154, %v1155
        %v1157 = vrot.slane %v1156, 1
        %v1158 = vmax.f32 %v1156, %v1157
        %v1159 = vmax.f32 %v1118, %v1119
        %v1160 = vrot.slane %v1159, 4
        %v1161 = vmax.f32 %v1159, %v1160
        %v1162 = vrot.slane %v1161, 2
        %v1163 = vmax.f32 %v1161, %v1162
        %v1164 = vrot.slane %v1163, 1
        %v1165 = vmax.f32 %v1163, %v1164
        %v1166 = vmax.f32 %v1120, %v1121
        %v1167 = vrot.slane %v1166, 4
        %v1168 = vmax.f32 %v1166, %v1167
        %v1169 = vrot.slane %v1168, 2
        %v1170 = vmax.f32 %v1168, %v1169
        %v1171 = vrot.slane %v1170, 1
        %v1172 = vmax.f32 %v1170, %v1171
        %v1173 = vmax.f32 %v1122, %v1123
        %v1174 = vrot.slane %v1173, 4
        %v1175 = vmax.f32 %v1173, %v1174
        %v1176 = vrot.slane %v1175, 2
        %v1177 = vmax.f32 %v1175, %v1176
        %v1178 = vrot.slane %v1177, 1
        %v1179 = vmax.f32 %v1177, %v1178
        %v1180 = vld [vmem:[%s1 + $0x90] sm:$0xf]
        %v1181 = vld [vmem:[%s1 + $0x94] sm:$0xf]
        %v1182 = vld [vmem:[%s1 + $0x98] sm:$0xf]
        %v1183 = vld [vmem:[%s1 + $0x9c] sm:$0xf]
        %v1184 = vld [vmem:[%s1 + $0xa0] sm:$0xf]
        %v1185 = vld [vmem:[%s1 + $0xa4] sm:$0xf]
        %v1186 = vld [vmem:[%s1 + $0xa8] sm:$0xf]
        %v1187 = vld [vmem:[%s1 + $0xac] sm:$0xf]
        %v1188 = vld [vmem:[%s1 + $0xb0] sm:$0xf]
        %v1189 = vld [vmem:[%s1 + $0xb4] sm:$0xf]
        %v1190 = vld [vmem:[%s1 + $0xb8] sm:$0xf]
        %v1191 = vld [vmem:[%s1 + $0xbc] sm:$0xf]
        %v1192 = vld [vmem:[%s1 + $0xc0] sm:$0xf]
        %v1193 = vld [vmem:[%s1 + $0xc4] sm:$0xf]
        %v1194 = vld [vmem:[%s1 + $0xc8] sm:$0xf]
        %v1195 = vld [vmem:[%s1 + $0xcc] sm:$0xf]
        %v1196 = vld [vmem:[#allocation2 + $0x2] sm:$0x1]
        %v1197 = vpack.c.bf16 %v1130, %v1130
        %v1198 = vpack.c.bf16 %v1137, %v1137
        %v1199 = vpack.c.bf16 %v1144, %v1144
        %v1200 = vpack.c.bf16 %v1151, %v1151
        %v1201 = vpack.c.bf16 %v1158, %v1158
        %v1202 = vpack.c.bf16 %v1165, %v1165
        %v1203 = vpack.c.bf16 %v1172, %v1172
        %v1204 = vpack.c.bf16 %v1179, %v1179
        %v1205 = vlaneseq
        %v1206 = vshrl.u32 %v1205, 7
        %v1207 = vsub.s32 0, %v1206
        %v1208 = vrot.slane %v1196, %v1207
        %v1217 = vunpack.c.l.b16 %v1197
        %v1218 = vunpack.c.l.b16 %v1198
        %v1219 = vunpack.c.l.b16 %v1199
        %v1220 = vunpack.c.l.b16 %v1200
        %v1221 = vunpack.c.l.b16 %v1201
        %v1222 = vunpack.c.l.b16 %v1202
        %v1223 = vunpack.c.l.b16 %v1203
        %v1224 = vunpack.c.l.b16 %v1204
        %vm1225 = vcmask 1041409
        %v1226 = vsel %vm1225, %v1218, %v1217
        %vm1227 = vcmask 1042434
        %v1228 = vsel %vm1227, %v1219, %v1226
        %vm1229 = vcmask 1043459
        %v1230 = vsel %vm1229, %v1220, %v1228
        %vm1231 = vcmask 1044484
        %v1232 = vsel %vm1231, %v1221, %v1230
        %vm1233 = vcmask 1045509
        %v1234 = vsel %vm1233, %v1222, %v1232
        %vm1235 = vcmask 1046534
        %v1236 = vsel %vm1235, %v1223, %v1234
        %vm1237 = vcmask 1047559
        %v1238 = vsel %vm1237, %v1224, %v1236
        %v1239 = vpack.c.b16 %v1238, %v1238
        %v1257 = vunpack.c.l.b16 %v1180
        %v1258 = vunpack.c.l.b16 %v1181
        %v1259 = vunpack.c.l.b16 %v1182
        %v1260 = vunpack.c.l.b16 %v1183
        %v1261 = vunpack.c.l.b16 %v1184
        %v1262 = vunpack.c.l.b16 %v1185
        %v1263 = vunpack.c.l.b16 %v1186
        %v1264 = vunpack.c.l.b16 %v1187
        %v1265 = vunpack.c.l.b16 %v1188
        %v1266 = vunpack.c.l.b16 %v1189
        %v1267 = vunpack.c.l.b16 %v1190
        %v1268 = vunpack.c.l.b16 %v1191
        %v1269 = vunpack.c.l.b16 %v1192
        %v1270 = vunpack.c.l.b16 %v1193
        %v1271 = vunpack.c.l.b16 %v1194
        %v1272 = vunpack.c.l.b16 %v1195
        %v1273 = vpack.c.b16 %v1258, %v1257
        %v1274 = vpack.c.b16 %v1260, %v1259
        %v1275 = vpack.c.b16 %v1262, %v1261
        %v1276 = vpack.c.b16 %v1264, %v1263
        %v1277 = vpack.c.b16 %v1266, %v1265
        %v1278 = vpack.c.b16 %v1268, %v1267
        %v1279 = vpack.c.b16 %v1270, %v1269
        %v1280 = vpack.c.b16 %v1272, %v1271
        %1289 = vmatprep.subr.bf16.mxu0 0
        %1290 = vmatpush1.bf16.msra.mxu0 %v1280
        %1291 = vmatprep.subr.bf16.mxu0 0
        %1292 = vmatpush1.bf16.msra.mxu0 %v1279
        %1293 = vmatprep.subr.bf16.mxu0 0
        %1294 = vmatpush1.bf16.msra.mxu0 %v1278
        %1295 = vmatprep.subr.bf16.mxu0 0
        %1296 = vmatpush1.bf16.msra.mxu0 %v1277
        %1297 = vmatprep.subr.bf16.mxu0 0
        %1298 = vmatpush1.bf16.msra.mxu0 %v1276
        %1299 = vmatprep.subr.bf16.mxu0 0
        %1300 = vmatpush1.bf16.msra.mxu0 %v1275
        %1301 = vmatprep.subr.bf16.mxu0 0
        %1302 = vmatpush1.bf16.msra.mxu0 %v1274
        %1303 = vmatprep.subr.bf16.mxu0 0
        %1304 = vmatpush1.bf16.msra.mxu0 %v1273
        %1305 = vmatprep.subr.bf16.mxu0 0
        %1306 = vmatpush2.bf16.msra.mxu0 0
        %1307 = vmatprep.subr.bf16.mxu0 0
        %1308 = vmatpush2.bf16.msra.mxu0 0
        %1309 = vmatprep.subr.bf16.mxu0 0
        %1310 = vmatpush2.bf16.msra.mxu0 0
        %1311 = vmatprep.subr.bf16.mxu0 0
        %1312 = vmatpush2.bf16.msra.mxu0 0
        %1313 = vmatprep.subr.bf16.mxu0 0
        %1314 = vmatpush2.bf16.msra.mxu0 0
        %1315 = vmatprep.subr.bf16.mxu0 0
        %1316 = vmatpush2.bf16.msra.mxu0 0
        %1317 = vmatprep.subr.bf16.mxu0 0
        %1318 = vmatpush2.bf16.msra.mxu0 0
        %1319 = vmatprep.subr.bf16.mxu0 0
        %1320 = vmatpush2.bf16.msra.mxu0 0
        %1321 = vmatprep.mubr.bf16.mxu0 0
        %1322 = vmatmul.mubr.bf16.gmra.mxu0 %v1239
        %v1323 = vpop.f32.mrf.mxu0
        %v1324 = vadd.f32 %v1208, %v1323
        %v1325 = vpop.f32.mrf.mxu0
        %v1326 = vpop.f32.mrf.mxu0
        %v1327 = vpop.f32.mrf.mxu0
        %1328 = vdwg.mxu0
        %v1329 = vmax.f32 %v1324, 0.0
        %v1330 = vld [vmem:[%s1 + $0xd0] sm:$0xf]
        %v1331 = vld [vmem:[%s1 + $0xd4] sm:$0xf]
        %v1332 = vld [vmem:[%s1 + $0xd8] sm:$0xf]
        %v1333 = vld [vmem:[%s1 + $0xdc] sm:$0xf]
        %v1334 = vld [vmem:[%s1 + $0xe0] sm:$0xf]
        %v1335 = vld [vmem:[%s1 + $0xe4] sm:$0xf]
        %v1336 = vld [vmem:[%s1 + $0xe8] sm:$0xf]
        %v1337 = vld [vmem:[%s1 + $0xec] sm:$0xf]
        %v1338 = vld [vmem:[%s1 + $0xf0] sm:$0xf]
        %v1339 = vld [vmem:[%s1 + $0xf4] sm:$0xf]
        %v1340 = vld [vmem:[%s1 + $0xf8] sm:$0xf]
        %v1341 = vld [vmem:[%s1 + $0xfc] sm:$0xf]
        %v1342 = vld [vmem:[%s1 + $0x100] sm:$0xf]
        %v1343 = vld [vmem:[%s1 + $0x104] sm:$0xf]
        %v1344 = vld [vmem:[%s1 + $0x108] sm:$0xf]
        %v1345 = vld [vmem:[%s1 + $0x10c] sm:$0xf]
        %v1346 = vld [vmem:[#allocation2 + $0x3] sm:$0x1]
        %v1347 = vpack.c.bf16 %v1329, %v1329
        %v1348 = vlaneseq
        %v1349 = vshrl.u32 %v1348, 7
        %v1350 = vsub.s32 0, %v1349
        %v1351 = vrot.slane %v1346, %v1350
        %v1368 = vunpack.c.l.b16 %v1330
        %v1369 = vunpack.c.l.b16 %v1331
        %v1370 = vunpack.c.l.b16 %v1332
        %v1371 = vunpack.c.l.b16 %v1333
        %v1372 = vunpack.c.l.b16 %v1334
        %v1373 = vunpack.c.l.b16 %v1335
        %v1374 = vunpack.c.l.b16 %v1336
        %v1375 = vunpack.c.l.b16 %v1337
        %v1376 = vunpack.c.l.b16 %v1338
        %v1377 = vunpack.c.l.b16 %v1339
        %v1378 = vunpack.c.l.b16 %v1340
        %v1379 = vunpack.c.l.b16 %v1341
        %v1380 = vunpack.c.l.b16 %v1342
        %v1381 = vunpack.c.l.b16 %v1343
        %v1382 = vunpack.c.l.b16 %v1344
        %v1383 = vunpack.c.l.b16 %v1345
        %v1384 = vpack.c.b16 %v1369, %v1368
        %v1385 = vpack.c.b16 %v1371, %v1370
        %v1386 = vpack.c.b16 %v1373, %v1372
        %v1387 = vpack.c.b16 %v1375, %v1374
        %v1388 = vpack.c.b16 %v1377, %v1376
        %v1389 = vpack.c.b16 %v1379, %v1378
        %v1390 = vpack.c.b16 %v1381, %v1380
        %v1391 = vpack.c.b16 %v1383, %v1382
        %1400 = vmatprep.subr.bf16.mxu0 0
        %1401 = vmatpush1.bf16.msra.mxu0 %v1391
        %1402 = vmatprep.subr.bf16.mxu0 0
        %1403 = vmatpush1.bf16.msra.mxu0 %v1390
        %1404 = vmatprep.subr.bf16.mxu0 0
        %1405 = vmatpush1.bf16.msra.mxu0 %v1389
        %1406 = vmatprep.subr.bf16.mxu0 0
        %1407 = vmatpush1.bf16.msra.mxu0 %v1388
        %1408 = vmatprep.subr.bf16.mxu0 0
        %1409 = vmatpush1.bf16.msra.mxu0 %v1387
        %1410 = vmatprep.subr.bf16.mxu0 0
        %1411 = vmatpush1.bf16.msra.mxu0 %v1386
        %1412 = vmatprep.subr.bf16.mxu0 0
        %1413 = vmatpush1.bf16.msra.mxu0 %v1385
        %1414 = vmatprep.subr.bf16.mxu0 0
        %1415 = vmatpush1.bf16.msra.mxu0 %v1384
        %1416 = vmatprep.subr.bf16.mxu0 0
        %1417 = vmatpush2.bf16.msra.mxu0 0
        %1418 = vmatprep.subr.bf16.mxu0 0
        %1419 = vmatpush2.bf16.msra.mxu0 0
        %1420 = vmatprep.subr.bf16.mxu0 0
        %1421 = vmatpush2.bf16.msra.mxu0 0
        %1422 = vmatprep.subr.bf16.mxu0 0
        %1423 = vmatpush2.bf16.msra.mxu0 0
        %1424 = vmatprep.subr.bf16.mxu0 0
        %1425 = vmatpush2.bf16.msra.mxu0 0
        %1426 = vmatprep.subr.bf16.mxu0 0
        %1427 = vmatpush2.bf16.msra.mxu0 0
        %1428 = vmatprep.subr.bf16.mxu0 0
        %1429 = vmatpush2.bf16.msra.mxu0 0
        %1430 = vmatprep.subr.bf16.mxu0 0
        %1431 = vmatpush2.bf16.msra.mxu0 0
        %1432 = vmatprep.mubr.bf16.mxu0 0
        %1433 = vmatmul.mubr.bf16.gmra.mxu0 %v1347
        %v1434 = vpop.f32.mrf.mxu0
        %v1435 = vadd.f32 %v1351, %v1434
        %v1436 = vpop.f32.mrf.mxu0
        %v1437 = vpop.f32.mrf.mxu0
        %v1438 = vpop.f32.mrf.mxu0
        %1439 = vdwg.mxu0
        %1440 = vst [vmem:[%s185] sm:$0xff] %v1435
        %p1441 = scmp.lt.s32.totalorder %s15, 1
        %s1442 = scalar_select %p1441, %s15, 1
        %s1443 = smul.addr %s1442, 8
        %s1444 = scalar_lea.vmem %s3, %s1443
        // Predicated region
        $region37: #{forward.1} parent=31 // pred_check
          %p1445 = pneg %p101
        $region38: #{forward.1} parent=31 // pred_check_branch
          %1447 = sbr.rel (%p1445) target = $region40
        $region39: #{forward.1} parent=31 // pred_region
          _
        $region40: #{forward.1} parent=31 // pred_fallthru
          _
      $region32: #{forward.1} parent=5 // pred_fallthru
        _
      %p1448 = scmp.le.s32.totalorder 2, %s10
      // Predicated region
      $region41: #{forward.1} parent=5 // pred_check
        %p1449 = pneg %p1448
      $region42: #{forward.1} parent=5 // pred_check_branch
        %1451 = sbr.rel (%p1449) target = $region44
      $region43: #{forward.1} parent=5 // pred_region
        %s1452 = ssub.s32 %s10, 2
        // Predicated region
        $region45: #{forward.1} parent=43 // pred_check
          %p1453 = pneg %p107
        $region46: #{forward.1} parent=43 // pred_check_branch
          %1455 = sbr.rel (%p1453) target = $region48
        $region47: #{forward.1} parent=43 // pred_region
          %p1456 = scmp.lt.s32.totalorder %s16, 1
          %s1457 = scalar_select %p1456, %s16, 1
          %s1458 = smul.addr %s1457, 8
          %s1459 = scalar_lea.vmem %s3, %s1458
        $region48: #{forward.1} parent=43 // pred_fallthru
          _
      $region44: #{forward.1} parent=5 // pred_fallthru
        _
    $region6: #{forward.1} parent=1 // loop_footer
      %s14 = sadd.s32 1, %s10
    $region7: #{forward.1} parent=1 // loop_footer_branch
      %9 = sbr.rel target = $region3
    $region8: #{forward.1} parent=1 // loop_exit
      _
    %1460 = vsyncpa [#allocation3], 1
    %s1461 = scalar_lea.sflag [#allocation3], 1
    %1462 = vsyncpa %s1461, 1

</llo_original>
